<compile_context>
chip_gen: v6e
topology: v6e:2x2x1
jax: 0.10.0
libtpu: 0.0.40
codegen_flags: <defaults>
</compile_context>

<pallas_src>
import functools

import jax
import jax.numpy as jnp
from jax.experimental import pallas as pl
from jax.experimental.pallas import tpu as pltpu

NUM_ANCHORS = 3


def _head_kernel(anchors_ref, offs_ref, f_ref, out_ref, *, inv_h, inv_w,
                 num_anchors):
    # anchors_ref: SMEM (A, 2) f32
    # offs_ref:    VMEM (2, HW) f32 -- row 0: j/W, row 1: i/H
    # f_ref:       VMEM block (1, A, C, HW) f32
    # out_ref:     VMEM block (1, A, C, HW) f32 fused output:
    #              ch0=cx  ch1=cy  ch2=sw  ch3=sh  ch4..=probabilities
    col_off = offs_ref[0:1, :]        # (1, HW)  j / W
    row_off = offs_ref[1:2, :]        # (1, HW)  i / H

    for a in range(num_anchors):      # A is small & static -> unrolled
        f = f_ref[0, a]               # (C, HW)

        # centers (matches the PyTorch code exactly:
        #   sigmoid(ch0)/H + j/W ; sigmoid(ch1)/W + i/H)
        cxy = jax.nn.sigmoid(f[0:2])              # (2, HW)
        cx = cxy[0:1] * inv_h + col_off
        cy = cxy[1:2] * inv_w + row_off

        # sizes: exp(ch2:4) * anchor(w, h)
        aw = anchors_ref[a, 0]
        ah = anchors_ref[a, 1]
        swh = jnp.exp(f[2:4])                     # (2, HW)
        sw = swh[0:1] * aw
        sh = swh[1:2] * ah

        # objectness / class probabilities
        probs = jax.nn.sigmoid(f[4:])             # (C-4, HW)

        # write channels directly into the fused output (no stack temporaries)
        out_ref[0, a, 0:1] = cx
        out_ref[0, a, 1:2] = cy
        out_ref[0, a, 2:3] = sw
        out_ref[0, a, 3:4] = sh
        out_ref[0, a, 4:] = probs


def head_forward(features, anchors, number_of_classes=1):
    """features: (B, A*(nc+5), H, W) f32, anchors: (A, 2) f32.

    Returns (centers, sizes, probabilities) shaped (B, A, H, W, last),
    matching the PyTorch module's output convention.
    """
    B, Ctot, H, W = features.shape
    A = NUM_ANCHORS
    C = number_of_classes + 5
    assert Ctot == A * C
    HW = H * W

    # lane-dense layout: flatten spatial dims onto the lane axis
    feats = features.reshape(B, A, C, HW)

    # flattened row-major cell offsets: offs[0, i*W+j] = j/W ; offs[1, i*W+j] = i/H
    col = jnp.arange(W, dtype=jnp.float32) * (1.0 / W)
    row = jnp.arange(H, dtype=jnp.float32) * (1.0 / H)
    offs = jnp.stack([jnp.tile(col, H), jnp.repeat(row, W)], axis=0)  # (2, HW)

    kernel = functools.partial(
        _head_kernel, inv_h=float(1.0 / H), inv_w=float(1.0 / W),
        num_anchors=A)

    fused = pl.pallas_call(
        kernel,
        out_shape=jax.ShapeDtypeStruct((B, A, C, HW), jnp.float32),
        grid=(B,),
        in_specs=[
            pl.BlockSpec(memory_space=pltpu.MemorySpace.SMEM),         # anchors
            pl.BlockSpec((2, HW), lambda b: (0, 0)),                   # offsets
            pl.BlockSpec((1, A, C, HW), lambda b: (b, 0, 0, 0)),       # features
        ],
        out_specs=pl.BlockSpec((1, A, C, HW), lambda b: (b, 0, 0, 0)),
        compiler_params=pltpu.CompilerParams(
            dimension_semantics=("parallel",)),
    )(anchors, offs, feats)

    # single transpose of the fused output to the PyTorch convention
    out = jnp.transpose(fused.reshape(B, A, C, H, W), (0, 1, 3, 4, 2))
    centers = out[..., 0:2]
    sizes = out[..., 2:4]
    probabilities = out[..., 4:]
    return centers, sizes, probabilities


def head_reference(features, anchors, number_of_classes=1):
    """Pure-JAX reference mirroring the PyTorch code."""
    B, Ctot, H, W = features.shape
    A = NUM_ANCHORS
    C = number_of_classes + 5
    f = features.reshape(B, A, C, H, W).transpose(0, 1, 3, 4, 2)
    row = jnp.linspace(0.0, 1.0 - 1.0 / H, H)
    col = jnp.linspace(0.0, 1.0 - 1.0 / W, W)
    ii, jj = jnp.meshgrid(row, col, indexing="ij")
    offs = jnp.stack([jj, ii], -1)                        # (H, W, 2)
    grid_t = jnp.array([H, W], jnp.float32)
    centers = jax.nn.sigmoid(f[..., :2]) / grid_t + offs
    sizes = jnp.exp(f[..., 2:4]) * anchors.reshape(A, 1, 1, 2)
    probabilities = jax.nn.sigmoid(f[..., 4:])
    return centers, sizes, probabilities


if __name__ == "__main__":
    key = jax.random.PRNGKey(0)
    B, H, W = 2, 16, 16
    number_of_classes = 1
    C = number_of_classes + 5

    k_f, _ = jax.random.split(key)
    features = jax.random.normal(k_f, (B, NUM_ANCHORS * C, H, W), dtype=jnp.float32)
    anchors = jnp.array([[0.1, 0.2], [0.3, 0.4], [0.5, 0.6]], dtype=jnp.float32)

    out = head_forward(features, anchors, number_of_classes)
    out = jax.block_until_ready(out)

    ref = head_reference(features, anchors, number_of_classes)
    for o, r in zip(out, ref):
        assert o.shape == r.shape, (o.shape, r.shape)
        assert jnp.allclose(o, r, atol=1e-5, rtol=1e-5), "mismatch vs reference"

    print("KERNEL_OK")
</pallas_src>

<mosaic_0001>
module attributes {stable_mosaic.version = 11 : i64} {
  func.func @_head_kernel(%arg0: i32, %arg1: memref<3x2xf32, #tpu.memory_space<smem>>, %arg2: memref<2x256xf32, #tpu.memory_space<vmem>>, %arg3: memref<1x3x6x256xf32, #tpu.memory_space<vmem>>, %arg4: memref<1x3x6x256xf32, #tpu.memory_space<vmem>>) attributes {dimension_semantics = [#tpu.dimension_semantics<parallel>], iteration_bounds = array<i64: 2>, scalar_prefetch = 0 : i64, scratch_operands = 0 : i64, tpu.core_type = #tpu.core_type<tc>, window_params = [{transform_indices = @transform_0, window_bounds = array<i64: 3, 2>}, {pipeline_mode = #tpu.pipeline_mode<synchronous>, transform_indices = @transform_1, window_bounds = array<i64: 2, 256>}, {transform_indices = @transform_2, window_bounds = array<i64: 1, 3, 6, 256>}, {transform_indices = @transform_3, window_bounds = array<i64: 1, 3, 6, 256>}]} {
    %c0 = arith.constant 0 : index
    %c0_0 = arith.constant 0 : index
    %0 = vector.load %arg2[%c0, %c0_0] : memref<2x256xf32, #tpu.memory_space<vmem>>, vector<1x256xf32>
    %c1 = arith.constant 1 : index
    %c0_1 = arith.constant 0 : index
    %1 = vector.load %arg2[%c1, %c0_1] : memref<2x256xf32, #tpu.memory_space<vmem>>, vector<1x256xf32>
    %c0_2 = arith.constant 0 : index
    %c0_3 = arith.constant 0 : index
    %c0_4 = arith.constant 0 : index
    %c0_5 = arith.constant 0 : index
    %2 = vector.load %arg3[%c0_2, %c0_3, %c0_4, %c0_5] : memref<1x3x6x256xf32, #tpu.memory_space<vmem>>, vector<1x1x6x256xf32>
    %3 = vector.shape_cast %2 : vector<1x1x6x256xf32> to vector<6x256xf32>
    %4 = vector.extract_strided_slice %3 {offsets = [0, 0], sizes = [2, 256], strides = [1, 1]} : vector<6x256xf32> to vector<2x256xf32>
    %5 = arith.negf %4 : vector<2x256xf32>
    %6 = math.exp %5 : vector<2x256xf32>
    %cst = arith.constant 1.000000e+00 : f32
    %7 = vector.broadcast %cst : f32 to vector<2x256xf32>
    %8 = arith.addf %7, %6 : vector<2x256xf32>
    %9 = arith.divf %7, %8 : vector<2x256xf32>
    %10 = vector.extract_strided_slice %9 {offsets = [0, 0], sizes = [1, 256], strides = [1, 1]} : vector<2x256xf32> to vector<1x256xf32>
    %cst_6 = arith.constant 6.250000e-02 : f32
    %11 = vector.broadcast %cst_6 : f32 to vector<1x256xf32>
    %12 = arith.mulf %10, %11 : vector<1x256xf32>
    %13 = arith.addf %12, %0 : vector<1x256xf32>
    %14 = vector.extract_strided_slice %9 {offsets = [1, 0], sizes = [1, 256], strides = [1, 1]} : vector<2x256xf32> to vector<1x256xf32>
    %cst_7 = arith.constant 6.250000e-02 : f32
    %15 = vector.broadcast %cst_7 : f32 to vector<1x256xf32>
    %16 = arith.mulf %14, %15 : vector<1x256xf32>
    %17 = arith.addf %16, %1 : vector<1x256xf32>
    %c0_8 = arith.constant 0 : index
    %c0_9 = arith.constant 0 : index
    %18 = memref.load %arg1[%c0_8, %c0_9] : memref<3x2xf32, #tpu.memory_space<smem>>
    %c0_10 = arith.constant 0 : index
    %c1_11 = arith.constant 1 : index
    %19 = memref.load %arg1[%c0_10, %c1_11] : memref<3x2xf32, #tpu.memory_space<smem>>
    %20 = vector.extract_strided_slice %3 {offsets = [2, 0], sizes = [2, 256], strides = [1, 1]} : vector<6x256xf32> to vector<2x256xf32>
    %21 = math.exp %20 : vector<2x256xf32>
    %22 = vector.extract_strided_slice %21 {offsets = [0, 0], sizes = [1, 256], strides = [1, 1]} : vector<2x256xf32> to vector<1x256xf32>
    %23 = vector.broadcast %18 : f32 to vector<1x256xf32>
    %24 = arith.mulf %22, %23 : vector<1x256xf32>
    %25 = vector.extract_strided_slice %21 {offsets = [1, 0], sizes = [1, 256], strides = [1, 1]} : vector<2x256xf32> to vector<1x256xf32>
    %26 = vector.broadcast %19 : f32 to vector<1x256xf32>
    %27 = arith.mulf %25, %26 : vector<1x256xf32>
    %28 = vector.extract_strided_slice %3 {offsets = [4, 0], sizes = [2, 256], strides = [1, 1]} : vector<6x256xf32> to vector<2x256xf32>
    %29 = arith.negf %28 : vector<2x256xf32>
    %30 = math.exp %29 : vector<2x256xf32>
    %cst_12 = arith.constant 1.000000e+00 : f32
    %31 = vector.broadcast %cst_12 : f32 to vector<2x256xf32>
    %32 = arith.addf %31, %30 : vector<2x256xf32>
    %33 = arith.divf %31, %32 : vector<2x256xf32>
    %c0_13 = arith.constant 0 : index
    %c0_14 = arith.constant 0 : index
    %c0_15 = arith.constant 0 : index
    %c0_16 = arith.constant 0 : index
    %34 = vector.load %arg4[%c0_13, %c0_14, %c0_15, %c0_16] : memref<1x3x6x256xf32, #tpu.memory_space<vmem>>, vector<1x1x1x256xf32>
    %35 = vector.shape_cast %34 : vector<1x1x1x256xf32> to vector<1x256xf32>
    %36 = vector.shape_cast %13 : vector<1x256xf32> to vector<1x1x1x256xf32>
    tpu.vector_store %arg4[%c0_13, %c0_14, %c0_15, %c0_16], %36 {strides = array<i32>} : memref<1x3x6x256xf32, #tpu.memory_space<vmem>>, vector<1x1x1x256xf32>,
    %c0_17 = arith.constant 0 : index
    %c0_18 = arith.constant 0 : index
    %c1_19 = arith.constant 1 : index
    %c0_20 = arith.constant 0 : index
    %37 = vector.load %arg4[%c0_17, %c0_18, %c1_19, %c0_20] : memref<1x3x6x256xf32, #tpu.memory_space<vmem>>, vector<1x1x1x256xf32>
    %38 = vector.shape_cast %37 : vector<1x1x1x256xf32> to vector<1x256xf32>
    %39 = vector.shape_cast %17 : vector<1x256xf32> to vector<1x1x1x256xf32>
    tpu.vector_store %arg4[%c0_17, %c0_18, %c1_19, %c0_20], %39 {strides = array<i32>} : memref<1x3x6x256xf32, #tpu.memory_space<vmem>>, vector<1x1x1x256xf32>,
    %c0_21 = arith.constant 0 : index
    %c0_22 = arith.constant 0 : index
    %c2 = arith.constant 2 : index
    %c0_23 = arith.constant 0 : index
    %40 = vector.load %arg4[%c0_21, %c0_22, %c2, %c0_23] : memref<1x3x6x256xf32, #tpu.memory_space<vmem>>, vector<1x1x1x256xf32>
    %41 = vector.shape_cast %40 : vector<1x1x1x256xf32> to vector<1x256xf32>
    %42 = vector.shape_cast %24 : vector<1x256xf32> to vector<1x1x1x256xf32>
    tpu.vector_store %arg4[%c0_21, %c0_22, %c2, %c0_23], %42 {strides = array<i32>} : memref<1x3x6x256xf32, #tpu.memory_space<vmem>>, vector<1x1x1x256xf32>,
    %c0_24 = arith.constant 0 : index
    %c0_25 = arith.constant 0 : index
    %c3 = arith.constant 3 : index
    %c0_26 = arith.constant 0 : index
    %43 = vector.load %arg4[%c0_24, %c0_25, %c3, %c0_26] : memref<1x3x6x256xf32, #tpu.memory_space<vmem>>, vector<1x1x1x256xf32>
    %44 = vector.shape_cast %43 : vector<1x1x1x256xf32> to vector<1x256xf32>
    %45 = vector.shape_cast %27 : vector<1x256xf32> to vector<1x1x1x256xf32>
    tpu.vector_store %arg4[%c0_24, %c0_25, %c3, %c0_26], %45 {strides = array<i32>} : memref<1x3x6x256xf32, #tpu.memory_space<vmem>>, vector<1x1x1x256xf32>,
    %c0_27 = arith.constant 0 : index
    %c0_28 = arith.constant 0 : index
    %c4 = arith.constant 4 : index
    %c0_29 = arith.constant 0 : index
    %46 = vector.load %arg4[%c0_27, %c0_28, %c4, %c0_29] : memref<1x3x6x256xf32, #tpu.memory_space<vmem>>, vector<1x1x2x256xf32>
    %47 = vector.shape_cast %46 : vector<1x1x2x256xf32> to vector<2x256xf32>
    %48 = vector.shape_cast %33 : vector<2x256xf32> to vector<1x1x2x256xf32>
    tpu.vector_store %arg4[%c0_27, %c0_28, %c4, %c0_29], %48 {strides = array<i32>} : memref<1x3x6x256xf32, #tpu.memory_space<vmem>>, vector<1x1x2x256xf32>,
    %c0_30 = arith.constant 0 : index
    %c1_31 = arith.constant 1 : index
    %c0_32 = arith.constant 0 : index
    %c0_33 = arith.constant 0 : index
    %49 = vector.load %arg3[%c0_30, %c1_31, %c0_32, %c0_33] : memref<1x3x6x256xf32, #tpu.memory_space<vmem>>, vector<1x1x6x256xf32>
    %50 = vector.shape_cast %49 : vector<1x1x6x256xf32> to vector<6x256xf32>
    %51 = vector.extract_strided_slice %50 {offsets = [0, 0], sizes = [2, 256], strides = [1, 1]} : vector<6x256xf32> to vector<2x256xf32>
    %52 = arith.negf %51 : vector<2x256xf32>
    %53 = math.exp %52 : vector<2x256xf32>
    %cst_34 = arith.constant 1.000000e+00 : f32
    %54 = vector.broadcast %cst_34 : f32 to vector<2x256xf32>
    %55 = arith.addf %54, %53 : vector<2x256xf32>
    %56 = arith.divf %54, %55 : vector<2x256xf32>
    %57 = vector.extract_strided_slice %56 {offsets = [0, 0], sizes = [1, 256], strides = [1, 1]} : vector<2x256xf32> to vector<1x256xf32>
    %cst_35 = arith.constant 6.250000e-02 : f32
    %58 = vector.broadcast %cst_35 : f32 to vector<1x256xf32>
    %59 = arith.mulf %57, %58 : vector<1x256xf32>
    %60 = arith.addf %59, %0 : vector<1x256xf32>
    %61 = vector.extract_strided_slice %56 {offsets = [1, 0], sizes = [1, 256], strides = [1, 1]} : vector<2x256xf32> to vector<1x256xf32>
    %cst_36 = arith.constant 6.250000e-02 : f32
    %62 = vector.broadcast %cst_36 : f32 to vector<1x256xf32>
    %63 = arith.mulf %61, %62 : vector<1x256xf32>
    %64 = arith.addf %63, %1 : vector<1x256xf32>
    %c1_37 = arith.constant 1 : index
    %c0_38 = arith.constant 0 : index
    %65 = memref.load %arg1[%c1_37, %c0_38] : memref<3x2xf32, #tpu.memory_space<smem>>
    %c1_39 = arith.constant 1 : index
    %c1_40 = arith.constant 1 : index
    %66 = memref.load %arg1[%c1_39, %c1_40] : memref<3x2xf32, #tpu.memory_space<smem>>
    %67 = vector.extract_strided_slice %50 {offsets = [2, 0], sizes = [2, 256], strides = [1, 1]} : vector<6x256xf32> to vector<2x256xf32>
    %68 = math.exp %67 : vector<2x256xf32>
    %69 = vector.extract_strided_slice %68 {offsets = [0, 0], sizes = [1, 256], strides = [1, 1]} : vector<2x256xf32> to vector<1x256xf32>
    %70 = vector.broadcast %65 : f32 to vector<1x256xf32>
    %71 = arith.mulf %69, %70 : vector<1x256xf32>
    %72 = vector.extract_strided_slice %68 {offsets = [1, 0], sizes = [1, 256], strides = [1, 1]} : vector<2x256xf32> to vector<1x256xf32>
    %73 = vector.broadcast %66 : f32 to vector<1x256xf32>
    %74 = arith.mulf %72, %73 : vector<1x256xf32>
    %75 = vector.extract_strided_slice %50 {offsets = [4, 0], sizes = [2, 256], strides = [1, 1]} : vector<6x256xf32> to vector<2x256xf32>
    %76 = arith.negf %75 : vector<2x256xf32>
    %77 = math.exp %76 : vector<2x256xf32>
    %cst_41 = arith.constant 1.000000e+00 : f32
    %78 = vector.broadcast %cst_41 : f32 to vector<2x256xf32>
    %79 = arith.addf %78, %77 : vector<2x256xf32>
    %80 = arith.divf %78, %79 : vector<2x256xf32>
    %c0_42 = arith.constant 0 : index
    %c1_43 = arith.constant 1 : index
    %c0_44 = arith.constant 0 : index
    %c0_45 = arith.constant 0 : index
    %81 = vector.load %arg4[%c0_42, %c1_43, %c0_44, %c0_45] : memref<1x3x6x256xf32, #tpu.memory_space<vmem>>, vector<1x1x1x256xf32>
    %82 = vector.shape_cast %81 : vector<1x1x1x256xf32> to vector<1x256xf32>
    %83 = vector.shape_cast %60 : vector<1x256xf32> to vector<1x1x1x256xf32>
    tpu.vector_store %arg4[%c0_42, %c1_43, %c0_44, %c0_45], %83 {strides = array<i32>} : memref<1x3x6x256xf32, #tpu.memory_space<vmem>>, vector<1x1x1x256xf32>,
    %c0_46 = arith.constant 0 : index
    %c1_47 = arith.constant 1 : index
    %c1_48 = arith.constant 1 : index
    %c0_49 = arith.constant 0 : index
    %84 = vector.load %arg4[%c0_46, %c1_47, %c1_48, %c0_49] : memref<1x3x6x256xf32, #tpu.memory_space<vmem>>, vector<1x1x1x256xf32>
    %85 = vector.shape_cast %84 : vector<1x1x1x256xf32> to vector<1x256xf32>
    %86 = vector.shape_cast %64 : vector<1x256xf32> to vector<1x1x1x256xf32>
    tpu.vector_store %arg4[%c0_46, %c1_47, %c1_48, %c0_49], %86 {strides = array<i32>} : memref<1x3x6x256xf32, #tpu.memory_space<vmem>>, vector<1x1x1x256xf32>,
    %c0_50 = arith.constant 0 : index
    %c1_51 = arith.constant 1 : index
    %c2_52 = arith.constant 2 : index
    %c0_53 = arith.constant 0 : index
    %87 = vector.load %arg4[%c0_50, %c1_51, %c2_52, %c0_53] : memref<1x3x6x256xf32, #tpu.memory_space<vmem>>, vector<1x1x1x256xf32>
    %88 = vector.shape_cast %87 : vector<1x1x1x256xf32> to vector<1x256xf32>
    %89 = vector.shape_cast %71 : vector<1x256xf32> to vector<1x1x1x256xf32>
    tpu.vector_store %arg4[%c0_50, %c1_51, %c2_52, %c0_53], %89 {strides = array<i32>} : memref<1x3x6x256xf32, #tpu.memory_space<vmem>>, vector<1x1x1x256xf32>,
    %c0_54 = arith.constant 0 : index
    %c1_55 = arith.constant 1 : index
    %c3_56 = arith.constant 3 : index
    %c0_57 = arith.constant 0 : index
    %90 = vector.load %arg4[%c0_54, %c1_55, %c3_56, %c0_57] : memref<1x3x6x256xf32, #tpu.memory_space<vmem>>, vector<1x1x1x256xf32>
    %91 = vector.shape_cast %90 : vector<1x1x1x256xf32> to vector<1x256xf32>
    %92 = vector.shape_cast %74 : vector<1x256xf32> to vector<1x1x1x256xf32>
    tpu.vector_store %arg4[%c0_54, %c1_55, %c3_56, %c0_57], %92 {strides = array<i32>} : memref<1x3x6x256xf32, #tpu.memory_space<vmem>>, vector<1x1x1x256xf32>,
    %c0_58 = arith.constant 0 : index
    %c1_59 = arith.constant 1 : index
    %c4_60 = arith.constant 4 : index
    %c0_61 = arith.constant 0 : index
    %93 = vector.load %arg4[%c0_58, %c1_59, %c4_60, %c0_61] : memref<1x3x6x256xf32, #tpu.memory_space<vmem>>, vector<1x1x2x256xf32>
    %94 = vector.shape_cast %93 : vector<1x1x2x256xf32> to vector<2x256xf32>
    %95 = vector.shape_cast %80 : vector<2x256xf32> to vector<1x1x2x256xf32>
    tpu.vector_store %arg4[%c0_58, %c1_59, %c4_60, %c0_61], %95 {strides = array<i32>} : memref<1x3x6x256xf32, #tpu.memory_space<vmem>>, vector<1x1x2x256xf32>,
    %c0_62 = arith.constant 0 : index
    %c2_63 = arith.constant 2 : index
    %c0_64 = arith.constant 0 : index
    %c0_65 = arith.constant 0 : index
    %96 = vector.load %arg3[%c0_62, %c2_63, %c0_64, %c0_65] : memref<1x3x6x256xf32, #tpu.memory_space<vmem>>, vector<1x1x6x256xf32>
    %97 = vector.shape_cast %96 : vector<1x1x6x256xf32> to vector<6x256xf32>
    %98 = vector.extract_strided_slice %97 {offsets = [0, 0], sizes = [2, 256], strides = [1, 1]} : vector<6x256xf32> to vector<2x256xf32>
    %99 = arith.negf %98 : vector<2x256xf32>
    %100 = math.exp %99 : vector<2x256xf32>
    %cst_66 = arith.constant 1.000000e+00 : f32
    %101 = vector.broadcast %cst_66 : f32 to vector<2x256xf32>
    %102 = arith.addf %101, %100 : vector<2x256xf32>
    %103 = arith.divf %101, %102 : vector<2x256xf32>
    %104 = vector.extract_strided_slice %103 {offsets = [0, 0], sizes = [1, 256], strides = [1, 1]} : vector<2x256xf32> to vector<1x256xf32>
    %cst_67 = arith.constant 6.250000e-02 : f32
    %105 = vector.broadcast %cst_67 : f32 to vector<1x256xf32>
    %106 = arith.mulf %104, %105 : vector<1x256xf32>
    %107 = arith.addf %106, %0 : vector<1x256xf32>
    %108 = vector.extract_strided_slice %103 {offsets = [1, 0], sizes = [1, 256], strides = [1, 1]} : vector<2x256xf32> to vector<1x256xf32>
    %cst_68 = arith.constant 6.250000e-02 : f32
    %109 = vector.broadcast %cst_68 : f32 to vector<1x256xf32>
    %110 = arith.mulf %108, %109 : vector<1x256xf32>
    %111 = arith.addf %110, %1 : vector<1x256xf32>
    %c2_69 = arith.constant 2 : index
    %c0_70 = arith.constant 0 : index
    %112 = memref.load %arg1[%c2_69, %c0_70] : memref<3x2xf32, #tpu.memory_space<smem>>
    %c2_71 = arith.constant 2 : index
    %c1_72 = arith.constant 1 : index
    %113 = memref.load %arg1[%c2_71, %c1_72] : memref<3x2xf32, #tpu.memory_space<smem>>
    %114 = vector.extract_strided_slice %97 {offsets = [2, 0], sizes = [2, 256], strides = [1, 1]} : vector<6x256xf32> to vector<2x256xf32>
    %115 = math.exp %114 : vector<2x256xf32>
    %116 = vector.extract_strided_slice %115 {offsets = [0, 0], sizes = [1, 256], strides = [1, 1]} : vector<2x256xf32> to vector<1x256xf32>
    %117 = vector.broadcast %112 : f32 to vector<1x256xf32>
    %118 = arith.mulf %116, %117 : vector<1x256xf32>
    %119 = vector.extract_strided_slice %115 {offsets = [1, 0], sizes = [1, 256], strides = [1, 1]} : vector<2x256xf32> to vector<1x256xf32>
    %120 = vector.broadcast %113 : f32 to vector<1x256xf32>
    %121 = arith.mulf %119, %120 : vector<1x256xf32>
    %122 = vector.extract_strided_slice %97 {offsets = [4, 0], sizes = [2, 256], strides = [1, 1]} : vector<6x256xf32> to vector<2x256xf32>
    %123 = arith.negf %122 : vector<2x256xf32>
    %124 = math.exp %123 : vector<2x256xf32>
    %cst_73 = arith.constant 1.000000e+00 : f32
    %125 = vector.broadcast %cst_73 : f32 to vector<2x256xf32>
    %126 = arith.addf %125, %124 : vector<2x256xf32>
    %127 = arith.divf %125, %126 : vector<2x256xf32>
    %c0_74 = arith.constant 0 : index
    %c2_75 = arith.constant 2 : index
    %c0_76 = arith.constant 0 : index
    %c0_77 = arith.constant 0 : index
    %128 = vector.load %arg4[%c0_74, %c2_75, %c0_76, %c0_77] : memref<1x3x6x256xf32, #tpu.memory_space<vmem>>, vector<1x1x1x256xf32>
    %129 = vector.shape_cast %128 : vector<1x1x1x256xf32> to vector<1x256xf32>
    %130 = vector.shape_cast %107 : vector<1x256xf32> to vector<1x1x1x256xf32>
    tpu.vector_store %arg4[%c0_74, %c2_75, %c0_76, %c0_77], %130 {strides = array<i32>} : memref<1x3x6x256xf32, #tpu.memory_space<vmem>>, vector<1x1x1x256xf32>,
    %c0_78 = arith.constant 0 : index
    %c2_79 = arith.constant 2 : index
    %c1_80 = arith.constant 1 : index
    %c0_81 = arith.constant 0 : index
    %131 = vector.load %arg4[%c0_78, %c2_79, %c1_80, %c0_81] : memref<1x3x6x256xf32, #tpu.memory_space<vmem>>, vector<1x1x1x256xf32>
    %132 = vector.shape_cast %131 : vector<1x1x1x256xf32> to vector<1x256xf32>
    %133 = vector.shape_cast %111 : vector<1x256xf32> to vector<1x1x1x256xf32>
    tpu.vector_store %arg4[%c0_78, %c2_79, %c1_80, %c0_81], %133 {strides = array<i32>} : memref<1x3x6x256xf32, #tpu.memory_space<vmem>>, vector<1x1x1x256xf32>,
    %c0_82 = arith.constant 0 : index
    %c2_83 = arith.constant 2 : index
    %c2_84 = arith.constant 2 : index
    %c0_85 = arith.constant 0 : index
    %134 = vector.load %arg4[%c0_82, %c2_83, %c2_84, %c0_85] : memref<1x3x6x256xf32, #tpu.memory_space<vmem>>, vector<1x1x1x256xf32>
    %135 = vector.shape_cast %134 : vector<1x1x1x256xf32> to vector<1x256xf32>
    %136 = vector.shape_cast %118 : vector<1x256xf32> to vector<1x1x1x256xf32>
    tpu.vector_store %arg4[%c0_82, %c2_83, %c2_84, %c0_85], %136 {strides = array<i32>} : memref<1x3x6x256xf32, #tpu.memory_space<vmem>>, vector<1x1x1x256xf32>,
    %c0_86 = arith.constant 0 : index
    %c2_87 = arith.constant 2 : index
    %c3_88 = arith.constant 3 : index
    %c0_89 = arith.constant 0 : index
    %137 = vector.load %arg4[%c0_86, %c2_87, %c3_88, %c0_89] : memref<1x3x6x256xf32, #tpu.memory_space<vmem>>, vector<1x1x1x256xf32>
    %138 = vector.shape_cast %137 : vector<1x1x1x256xf32> to vector<1x256xf32>
    %139 = vector.shape_cast %121 : vector<1x256xf32> to vector<1x1x1x256xf32>
    tpu.vector_store %arg4[%c0_86, %c2_87, %c3_88, %c0_89], %139 {strides = array<i32>} : memref<1x3x6x256xf32, #tpu.memory_space<vmem>>, vector<1x1x1x256xf32>,
    %c0_90 = arith.constant 0 : index
    %c2_91 = arith.constant 2 : index
    %c4_92 = arith.constant 4 : index
    %c0_93 = arith.constant 0 : index
    %140 = vector.load %arg4[%c0_90, %c2_91, %c4_92, %c0_93] : memref<1x3x6x256xf32, #tpu.memory_space<vmem>>, vector<1x1x2x256xf32>
    %141 = vector.shape_cast %140 : vector<1x1x2x256xf32> to vector<2x256xf32>
    %142 = vector.shape_cast %127 : vector<2x256xf32> to vector<1x1x2x256xf32>
    tpu.vector_store %arg4[%c0_90, %c2_91, %c4_92, %c0_93], %142 {strides = array<i32>} : memref<1x3x6x256xf32, #tpu.memory_space<vmem>>, vector<1x1x2x256xf32>,
    return
  }
  func.func @transform_0(%arg0: i32) -> (i32, i32) {
    %c0_i32 = arith.constant 0 : i32
    %c0_i32_0 = arith.constant 0 : i32
    %c0_i32_1 = arith.constant 0 : i32
    return %c0_i32, %c0_i32_0 : i32, i32
  }
  func.func @transform_1(%arg0: i32) -> (i32, i32) {
    %c0_i32 = arith.constant 0 : i32
    %c0_i32_0 = arith.constant 0 : i32
    %c0_i32_1 = arith.constant 0 : i32
    return %c0_i32, %c0_i32_0 : i32, i32
  }
  func.func @transform_2(%arg0: i32) -> (i32, i32, i32, i32) {
    %c0_i32 = arith.constant 0 : i32
    %c0_i32_0 = arith.constant 0 : i32
    %c0_i32_1 = arith.constant 0 : i32
    %c0_i32_2 = arith.constant 0 : i32
    return %arg0, %c0_i32, %c0_i32_0, %c0_i32_1 : i32, i32, i32, i32
  }
  func.func @transform_3(%arg0: i32) -> (i32, i32, i32, i32) {
    %c0_i32 = arith.constant 0 : i32
    %c0_i32_0 = arith.constant 0 : i32
    %c0_i32_1 = arith.constant 0 : i32
    %c0_i32_2 = arith.constant 0 : i32
    return %arg0, %c0_i32, %c0_i32_0, %c0_i32_1 : i32, i32, i32, i32
  }
}

</mosaic_0001>

<llo_original>
// kernel: tpu_custom_call.1
$region0: #{tpu_custom_call.1}
  #allocation0 [shape = 'u32[]', space=smem, size = 0x4, offset = 0x4, fixed_abs, tag = 'smem constant byte address 0x4 - core index']
  #allocation1 [shape = 'u32[144,128]{1,0:T(1,128)}', space=vmem, size = 0x12000, scoped, tag = 'internal scratch']
  %s0 = inlined_call_operand.vmem [shape: f32[3,2], index: 0, kind: input, shape index: {}]
  %s1 = inlined_call_operand.vmem [shape: f32[2,256], index: 1, kind: input, shape index: {}]
  %s2 = inlined_call_operand.vmem [shape: f32[2,3,6,256], index: 2, kind: input, shape index: {}]
  %s3 = inlined_call_operand.vmem [shape: f32[2,3,6,256], index: 3, kind: output, shape index: {}]
  %s4 = sld [smem:[#allocation0]]
  $region49: #{tpu_custom_call.1} parent=0
    _
  %s6 = ssub.s32 1, %s4
  %s7 = scalar_select 0, %s6, %s4
  $region1: #{tpu_custom_call.1} parent=0
    #allocation2 [shape = 'u8[2048]{0}', space=smem, size = 0x800, scoped, tag = 'input window, operand 0, single buffered']
    #allocation3 [shape = 's32[2]{0}', space=sflag, size = 0x8, scoped, tag = 'scoped memory for tpu_custom_call.1']
    %8 = vsyncpa [#allocation3], 0
    loop: start=0, step=1, limit=4
    $region2: #{tpu_custom_call.1} parent=1 // loop_pre_header
      _
    $region3: #{tpu_custom_call.1} parent=1 // loop_header
      %s10 = sphi 0, %s14
      %p11 = scmp.ge.s32.totalorder %s10, 4
      %s18 = sphi 0, %s18
      %s20 = sphi 0, %s18
      %s21 = sphi 0, %s20
      %s35 = sphi 0, %s21
      %s39 = sphi 0, %s39
      %s41 = sphi 0, %s39
      %s42 = sphi 0, %s41
      %s56 = sphi 0, %s42
      %s62 = sphi 0, %s64
      %s65 = sphi 0, %s62
      %s66 = sphi 0, %s65
      %s82 = sphi 0, %s66
      %s88 = sphi 0, %s90
      %s91 = sphi 0, %s88
      %s92 = sphi 0, %s91
      %s108 = sphi 0, %s92
    $region4: #{tpu_custom_call.1} parent=1 // loop_header_branch
      %13 = sbr.rel (%p11) target = $region8
    $region5: #{tpu_custom_call.1} parent=1 // loop_body
      %s15 = ssub.s32 %s10, 1
      %s16 = ssub.s32 %s10, 2
      %s17 = sadd.s32 %s10, 1
      %s19 = sadd.s32 %s18, 1
      %p22 = scmp.eq.s32.totalorder %s10, 1
      %p23 = scmp.ne.s32.totalorder %s18, %s20
      %p24 = scmp.eq.s32.totalorder %s10, 0
      %p25 = por %p23, %p24
      %p26 = scmp.ne.s32.totalorder %s18, %s20
      %p27 = scmp.eq.s32.totalorder %s15, 1
      %p28 = por %p26, %p27
      %p29 = scmp.ne.s32.totalorder %s20, %s21
      %p30 = scmp.eq.s32.totalorder %s15, 0
      %p31 = por %p29, %p30
      %p32 = scmp.ne.s32.totalorder %s20, %s21
      %p33 = scmp.eq.s32.totalorder %s16, 1
      %p34 = por %p32, %p33
      %p36 = scmp.ne.s32.totalorder %s21, %s35
      %p37 = scmp.eq.s32.totalorder %s16, 0
      %p38 = por %p36, %p37
      %s40 = sadd.s32 %s39, 1
      %p43 = scmp.eq.s32.totalorder %s10, 1
      %p44 = scmp.ne.s32.totalorder %s39, %s41
      %p45 = scmp.eq.s32.totalorder %s10, 0
      %p46 = por %p44, %p45
      %p47 = scmp.ne.s32.totalorder %s39, %s41
      %p48 = scmp.eq.s32.totalorder %s15, 1
      %p49 = por %p47, %p48
      %p50 = scmp.ne.s32.totalorder %s41, %s42
      %p51 = scmp.eq.s32.totalorder %s15, 0
      %p52 = por %p50, %p51
      %p53 = scmp.ne.s32.totalorder %s41, %s42
      %p54 = scmp.eq.s32.totalorder %s16, 1
      %p55 = por %p53, %p54
      %p57 = scmp.ne.s32.totalorder %s42, %s56
      %p58 = scmp.eq.s32.totalorder %s16, 0
      %p59 = por %p57, %p58
      %s60 = ssub.s32 %s10, %s17
      %p61 = scmp.eq.s32.totalorder %s60, 0
      %s63 = sadd.s32 %s62, 1
      %s64 = scalar_select %p61, %s62, %s63
      %p67 = pneg %p61
      %p68 = scmp.eq.s32.totalorder %s10, 1
      %p69 = por %p67, %p68
      %p70 = scmp.ne.s32.totalorder %s62, %s65
      %p71 = scmp.eq.s32.totalorder %s10, 0
      %p72 = por %p70, %p71
      %p73 = scmp.ne.s32.totalorder %s62, %s65
      %p74 = scmp.eq.s32.totalorder %s15, 1
      %p75 = por %p73, %p74
      %p76 = scmp.ne.s32.totalorder %s65, %s66
      %p77 = scmp.eq.s32.totalorder %s15, 0
      %p78 = por %p76, %p77
      %p79 = scmp.ne.s32.totalorder %s65, %s66
      %p80 = scmp.eq.s32.totalorder %s16, 1
      %p81 = por %p79, %p80
      %p83 = scmp.ne.s32.totalorder %s66, %s82
      %p84 = scmp.eq.s32.totalorder %s16, 0
      %p85 = por %p83, %p84
      %s86 = ssub.s32 %s10, %s17
      %p87 = scmp.eq.s32.totalorder %s86, 0
      %s89 = sadd.s32 %s88, 1
      %s90 = scalar_select %p87, %s88, %s89
      %p93 = pneg %p87
      %p94 = scmp.eq.s32.totalorder %s10, 1
      %p95 = por %p93, %p94
      %p96 = scmp.ne.s32.totalorder %s88, %s91
      %p97 = scmp.eq.s32.totalorder %s10, 0
      %p98 = por %p96, %p97
      %p99 = scmp.ne.s32.totalorder %s88, %s91
      %p100 = scmp.eq.s32.totalorder %s15, 1
      %p101 = por %p99, %p100
      %p102 = scmp.ne.s32.totalorder %s91, %s92
      %p103 = scmp.eq.s32.totalorder %s15, 0
      %p104 = por %p102, %p103
      %p105 = scmp.ne.s32.totalorder %s91, %s92
      %p106 = scmp.eq.s32.totalorder %s16, 1
      %p107 = por %p105, %p106
      %p109 = scmp.ne.s32.totalorder %s92, %s108
      %p110 = scmp.eq.s32.totalorder %s16, 0
      %p111 = por %p109, %p110
      %p112 = scmp.le.s32.totalorder 1, %s10
      %p113 = scmp.lt.s32.totalorder %s10, 3
      %p114 = pnand %p112, %p113
      %p115 = pneg %p114
      // Predicated region
      $region9: #{tpu_custom_call.1} parent=5 // pred_check
        _
      $region10: #{tpu_custom_call.1} parent=5 // pred_check_branch
        %117 = sbr.rel (%p114) target = $region12
      $region11: #{tpu_custom_call.1} parent=5 // pred_region
        %s118 = ssub.s32 %s10, 1
        // Predicated region
        $region13: #{tpu_custom_call.1} parent=11 // pred_check
          %p119 = pneg %p31
        $region14: #{tpu_custom_call.1} parent=11 // pred_check_branch
          %121 = sbr.rel (%p119) target = $region16
        $region15: #{tpu_custom_call.1} parent=11 // pred_region
          %s123 = ssub.s32 64, 64
          %124 = vsyncadd [#allocation3], %s123
          %s126 = sshll.u32 %s0, 4
          %s127 = int_to_ptr.vmem [resolvable:$true] %s126
          %129 = dma.vmem_to_smem %s127, 64, [#allocation2], [#allocation3]
        $region16: #{tpu_custom_call.1} parent=11 // pred_fallthru
          _
        // Predicated region
        $region17: #{tpu_custom_call.1} parent=11 // pred_check
          %p130 = pneg %p52
        $region18: #{tpu_custom_call.1} parent=11 // pred_check_branch
          %132 = sbr.rel (%p130) target = $region20
        $region19: #{tpu_custom_call.1} parent=11 // pred_region
          _
        $region20: #{tpu_custom_call.1} parent=11 // pred_fallthru
          _
      $region12: #{tpu_custom_call.1} parent=5 // pred_fallthru
        _
      %p133 = scmp.lt.s32.totalorder %s10, 2
      // Predicated region
      $region21: #{tpu_custom_call.1} parent=5 // pred_check
        %p134 = pneg %p133
      $region22: #{tpu_custom_call.1} parent=5 // pred_check_branch
        %136 = sbr.rel (%p134) target = $region24
      $region23: #{tpu_custom_call.1} parent=5 // pred_region
        // Predicated region
        $region25: #{tpu_custom_call.1} parent=23 // pred_check
          %p137 = pneg %p72
        $region26: #{tpu_custom_call.1} parent=23 // pred_check_branch
          %139 = sbr.rel (%p137) target = $region28
        $region27: #{tpu_custom_call.1} parent=23 // pred_region
          %p140 = scmp.lt.s32.totalorder %s10, 1
          %s141 = scalar_select %p140, %s10, 1
          %s142 = smul.addr %s141, 6
          %s143 = smul.addr %s142, 8
          %s144 = scalar_lea.vmem %s2, %s143
        $region28: #{tpu_custom_call.1} parent=23 // pred_fallthru
          _
      $region24: #{tpu_custom_call.1} parent=5 // pred_fallthru
        _
      %p145 = scmp.le.s32.totalorder 1, %s10
      %p146 = scmp.lt.s32.totalorder %s10, 3
      %p147 = pnand %p145, %p146
      %p148 = pneg %p147
      // Predicated region
      $region29: #{tpu_custom_call.1} parent=5 // pred_check
        _
      $region30: #{tpu_custom_call.1} parent=5 // pred_check_branch
        %150 = sbr.rel (%p147) target = $region32
      $region31: #{tpu_custom_call.1} parent=5 // pred_region
        %s151 = ssub.s32 %s10, 1
        // Predicated region
        $region33: #{tpu_custom_call.1} parent=31 // pred_check
          %p152 = pneg %p31
        $region34: #{tpu_custom_call.1} parent=31 // pred_check_branch
          %154 = sbr.rel (%p152) target = $region36
        $region35: #{tpu_custom_call.1} parent=31 // pred_region
          %155 = dma.done [#allocation3], 64
        $region36: #{tpu_custom_call.1} parent=31 // pred_fallthru
          _
        %156 = sfence
        %p157 = pneg %p31
        %p158 = pneg %p28
        %p159 = pneg %p52
        %p160 = pneg %p49
        %p161 = scmp.lt.s32.totalorder %s15, 1
        %s162 = scalar_select %p161, %s15, 1
        %s163 = smul.addr %s162, 6
        %s164 = smul.addr %s163, 8
        %s165 = scalar_lea.vmem %s2, %s164
        %p166 = pneg %p78
        %p167 = pneg %p75
        %p168 = pneg %p104
        %p169 = pneg %p101
        %p170 = scmp.lt.s32.totalorder %s15, 1
        %s171 = scalar_select %p170, %s15, 1
        %s172 = smul.addr %s171, 6
        %s173 = smul.addr %s172, 8
        %s174 = scalar_lea.vmem %s3, %s173
        %p175 = scmp.lt.s32.totalorder %s15, 1
        %s176 = scalar_select %p175, %s15, 1
        %s177 = smul.addr %s176, 6
        %s178 = smul.addr %s177, 8
        %s179 = scalar_lea.vmem %s2, %s178
        %p180 = scmp.lt.s32.totalorder %s15, 1
        %s181 = scalar_select %p180, %s15, 1
        %s182 = smul.addr %s181, 6
        %s183 = smul.addr %s182, 8
        %s184 = scalar_lea.vmem %s3, %s183
        %v185 = vld [vmem:[%s1] ss:$2 sm:$0x3]
        %s186 = scalar_lea.vmem %s1, 1
        %v187 = vld [vmem:[%s186] ss:$2 sm:$0x3]
        %v188 = vld [vmem:[%s179] sm:$0x3f]
        %v189 = vld [vmem:[%s179 + $0x8] sm:$0x3f]
        %v190 = vxor.u32 %v188, 2147483648
        %v191 = vxor.u32 %v189, 2147483648
        %v192 = vmul.f32 %v190, 1.442695
        %v193 = vpow.pop %v192
        %v194 = vmul.f32 %v191, 1.442695
        %v195 = vpow.pop %v194
        %v196 = vadd.f32 %v193, 1.0
        %v197 = vadd.f32 %v195, 1.0
        %v198 = vrcp.pop %v196
        %v199 = vmul.f32 1.0, %v198
        %v200 = vrcp.pop %v197
        %v201 = vmul.f32 1.0, %v200
        %v202 = vmul.f32 %v199, 0.0625
        %v203 = vmul.f32 %v201, 0.0625
        %v205 = vlaneseq
        %v206 = vshrl.u32 %v205, 7
        %v207 = vsub.s32 0, %v206
        %v208 = vrot.slane %v185, %v207
        %v209 = vlaneseq
        %v210 = vshrl.u32 %v209, 7
        %v211 = vsub.s32 1, %v210
        %v212 = vrot.slane %v185, %v211
        %v215 = vadd.f32 %v202, %v208
        %v216 = vadd.f32 %v203, %v212
        %v218 = vlaneseq
        %v219 = vshrl.u32 %v218, 7
        %v220 = vsub.s32 0, %v219
        %v221 = vrot.slane %v187, %v220
        %v222 = vlaneseq
        %v223 = vshrl.u32 %v222, 7
        %v224 = vsub.s32 1, %v223
        %v225 = vrot.slane %v187, %v224
        %v228 = vadd.f32 %v202, %v221
        %v229 = vadd.f32 %v203, %v225
        %s230 = sld [smem:[#allocation2]]
        %s231 = sld [smem:[#allocation2 + $0x1]]
        %v232 = vmul.f32 %v188, 1.442695
        %v233 = vpow.pop %v232
        %v234 = vmul.f32 %v189, 1.442695
        %v235 = vpow.pop %v234
        %v236 = vstv %s230
        %v237 = vmul.f32 %v233, %v236
        %v238 = vmul.f32 %v235, %v236
        %v239 = vstv %s231
        %v240 = vmul.f32 %v233, %v239
        %v241 = vmul.f32 %v235, %v239
        %v244 = vcombine.low %v215, %v216
        %v246 = vunpack.c.l.s4 1966171168
        %v247 = vunpack.c.0.s8 %v246
        %v248 = vlaneseq
        %v249 = vshrl.u32 %v248, 7
        %v250 = vsub.s32 %v247, %v249
        %v251 = vrot.slane %v244, %v250
        %v253 = vunpack.c.l.s4 1966171168
        %v254 = vunpack.c.0.s8 %v253
        %v255 = vlaneseq
        %v256 = vshrl.u32 %v255, 7
        %v257 = vsub.s32 %v254, %v256
        %v258 = vrot.slane %v251, %v257
        %v260 = vlaneseq
        %vm261 = vcmp.ge.s32.totalorder %v260, 0
        %vm262 = vcmp.lt.s32.totalorder %v260, 256
        %vm263 = vmand %vm261, %vm262
        %264 = vst.msk [vmem:[%s184] ss:$8 sm:$0x3] %vm263, %v258
        %265 = vst.msk [vmem:[%s184] ss:$8 sm:$0x0] %vm263, %v258
        %v268 = vcombine.low %v228, %v229
        %v270 = vunpack.c.l.s4 1966171168
        %v271 = vunpack.c.0.s8 %v270
        %v272 = vlaneseq
        %v273 = vshrl.u32 %v272, 7
        %v274 = vsub.s32 %v271, %v273
        %v275 = vrot.slane %v268, %v274
        %v276 = vcombine.high %v275, %v275
        %v278 = vunpack.c.l.s4 1966171168
        %v279 = vunpack.c.0.s8 %v278
        %v280 = vlaneseq
        %v281 = vshrl.u32 %v280, 7
        %v282 = vsub.s32 %v279, %v281
        %v283 = vrot.slane %v276, %v282
        %s285 = scalar_lea.vmem %s184, 1
        %286 = vst.msk [vmem:[%s285] ss:$8 sm:$0x3] %vm263, %v283
        %287 = vst.msk [vmem:[%s285] ss:$8 sm:$0x0] %vm263, %v283
        %v290 = vcombine.low %v237, %v238
        %v292 = vunpack.c.l.s4 1966171168
        %v293 = vunpack.c.0.s8 %v292
        %v294 = vlaneseq
        %v295 = vshrl.u32 %v294, 7
        %v296 = vsub.s32 %v293, %v295
        %v297 = vrot.slane %v290, %v296
        %v299 = vunpack.c.l.s4 1966171168
        %v300 = vunpack.c.0.s8 %v299
        %v301 = vlaneseq
        %v302 = vshrl.u32 %v301, 7
        %v303 = vsub.s32 %v300, %v302
        %v304 = vrot.slane %v297, %v303
        %v305 = vcombine.high %v304, %v304
        %s307 = scalar_lea.vmem %s184, 2
        %308 = vst.msk [vmem:[%s307] ss:$8 sm:$0x3] %vm263, %v305
        %309 = vst.msk [vmem:[%s307] ss:$8 sm:$0x0] %vm263, %v305
        %v312 = vcombine.low %v240, %v241
        %v314 = vunpack.c.l.s4 1966171168
        %v315 = vunpack.c.0.s8 %v314
        %v316 = vlaneseq
        %v317 = vshrl.u32 %v316, 7
        %v318 = vsub.s32 %v315, %v317
        %v319 = vrot.slane %v312, %v318
        %v320 = vcombine.high %v319, %v319
        %v322 = vunpack.c.l.s4 1966171168
        %v323 = vunpack.c.0.s8 %v322
        %v324 = vlaneseq
        %v325 = vshrl.u32 %v324, 7
        %v326 = vsub.s32 %v323, %v325
        %v327 = vrot.slane %v320, %v326
        %v328 = vcombine.high %v327, %v327
        %s330 = scalar_lea.vmem %s184, 3
        %331 = vst.msk [vmem:[%s330] ss:$8 sm:$0x3] %vm263, %v328
        %332 = vst.msk [vmem:[%s330] ss:$8 sm:$0x0] %vm263, %v328
        %333 = vst [vmem:[%s184] sm:$0x30] %v199
        %334 = vst [vmem:[%s184 + $0x8] sm:$0x30] %v201
        %s335 = scalar_lea.vmem %s179, 16
        %v336 = vld [vmem:[%s335] sm:$0x3f]
        %v337 = vld [vmem:[%s335 + $0x8] sm:$0x3f]
        %v338 = vxor.u32 %v336, 2147483648
        %v339 = vxor.u32 %v337, 2147483648
        %v340 = vmul.f32 %v338, 1.442695
        %v341 = vpow.pop %v340
        %v342 = vmul.f32 %v339, 1.442695
        %v343 = vpow.pop %v342
        %v344 = vadd.f32 %v341, 1.0
        %v345 = vadd.f32 %v343, 1.0
        %v346 = vrcp.pop %v344
        %v347 = vmul.f32 1.0, %v346
        %v348 = vrcp.pop %v345
        %v349 = vmul.f32 1.0, %v348
        %v350 = vmul.f32 %v347, 0.0625
        %v351 = vmul.f32 %v349, 0.0625
        %v352 = vadd.f32 %v350, %v208
        %v353 = vadd.f32 %v351, %v212
        %v354 = vadd.f32 %v350, %v221
        %v355 = vadd.f32 %v351, %v225
        %s356 = sld [smem:[#allocation2 + $0x80]]
        %s357 = sld [smem:[#allocation2 + $0x81]]
        %v358 = vmul.f32 %v336, 1.442695
        %v359 = vpow.pop %v358
        %v360 = vmul.f32 %v337, 1.442695
        %v361 = vpow.pop %v360
        %v362 = vstv %s356
        %v363 = vmul.f32 %v359, %v362
        %v364 = vmul.f32 %v361, %v362
        %v365 = vstv %s357
        %v366 = vmul.f32 %v359, %v365
        %v367 = vmul.f32 %v361, %v365
        %v370 = vcombine.low %v352, %v353
        %v372 = vunpack.c.l.s4 1966171168
        %v373 = vunpack.c.0.s8 %v372
        %v374 = vlaneseq
        %v375 = vshrl.u32 %v374, 7
        %v376 = vsub.s32 %v373, %v375
        %v377 = vrot.slane %v370, %v376
        %v379 = vunpack.c.l.s4 1966171168
        %v380 = vunpack.c.0.s8 %v379
        %v381 = vlaneseq
        %v382 = vshrl.u32 %v381, 7
        %v383 = vsub.s32 %v380, %v382
        %v384 = vrot.slane %v377, %v383
        %s386 = scalar_lea.vmem %s184, 16
        %387 = vst.msk [vmem:[%s386] ss:$8 sm:$0x3] %vm263, %v384
        %388 = vst.msk [vmem:[%s386] ss:$8 sm:$0x0] %vm263, %v384
        %v391 = vcombine.low %v354, %v355
        %v393 = vunpack.c.l.s4 1966171168
        %v394 = vunpack.c.0.s8 %v393
        %v395 = vlaneseq
        %v396 = vshrl.u32 %v395, 7
        %v397 = vsub.s32 %v394, %v396
        %v398 = vrot.slane %v391, %v397
        %v399 = vcombine.high %v398, %v398
        %v401 = vunpack.c.l.s4 1966171168
        %v402 = vunpack.c.0.s8 %v401
        %v403 = vlaneseq
        %v404 = vshrl.u32 %v403, 7
        %v405 = vsub.s32 %v402, %v404
        %v406 = vrot.slane %v399, %v405
        %s408 = scalar_lea.vmem %s386, 1
        %409 = vst.msk [vmem:[%s408] ss:$8 sm:$0x3] %vm263, %v406
        %410 = vst.msk [vmem:[%s408] ss:$8 sm:$0x0] %vm263, %v406
        %v413 = vcombine.low %v363, %v364
        %v415 = vunpack.c.l.s4 1966171168
        %v416 = vunpack.c.0.s8 %v415
        %v417 = vlaneseq
        %v418 = vshrl.u32 %v417, 7
        %v419 = vsub.s32 %v416, %v418
        %v420 = vrot.slane %v413, %v419
        %v422 = vunpack.c.l.s4 1966171168
        %v423 = vunpack.c.0.s8 %v422
        %v424 = vlaneseq
        %v425 = vshrl.u32 %v424, 7
        %v426 = vsub.s32 %v423, %v425
        %v427 = vrot.slane %v420, %v426
        %v428 = vcombine.high %v427, %v427
        %s430 = scalar_lea.vmem %s386, 2
        %431 = vst.msk [vmem:[%s430] ss:$8 sm:$0x3] %vm263, %v428
        %432 = vst.msk [vmem:[%s430] ss:$8 sm:$0x0] %vm263, %v428
        %v435 = vcombine.low %v366, %v367
        %v437 = vunpack.c.l.s4 1966171168
        %v438 = vunpack.c.0.s8 %v437
        %v439 = vlaneseq
        %v440 = vshrl.u32 %v439, 7
        %v441 = vsub.s32 %v438, %v440
        %v442 = vrot.slane %v435, %v441
        %v443 = vcombine.high %v442, %v442
        %v445 = vunpack.c.l.s4 1966171168
        %v446 = vunpack.c.0.s8 %v445
        %v447 = vlaneseq
        %v448 = vshrl.u32 %v447, 7
        %v449 = vsub.s32 %v446, %v448
        %v450 = vrot.slane %v443, %v449
        %v451 = vcombine.high %v450, %v450
        %s453 = scalar_lea.vmem %s386, 3
        %454 = vst.msk [vmem:[%s453] ss:$8 sm:$0x3] %vm263, %v451
        %455 = vst.msk [vmem:[%s453] ss:$8 sm:$0x0] %vm263, %v451
        %456 = vst [vmem:[%s386] sm:$0x30] %v347
        %457 = vst [vmem:[%s386 + $0x8] sm:$0x30] %v349
        %s458 = scalar_lea.vmem %s179, 32
        %v459 = vld [vmem:[%s458] sm:$0x3f]
        %v460 = vld [vmem:[%s458 + $0x8] sm:$0x3f]
        %v461 = vxor.u32 %v459, 2147483648
        %v462 = vxor.u32 %v460, 2147483648
        %v463 = vmul.f32 %v461, 1.442695
        %v464 = vpow.pop %v463
        %v465 = vmul.f32 %v462, 1.442695
        %v466 = vpow.pop %v465
        %v467 = vadd.f32 %v464, 1.0
        %v468 = vadd.f32 %v466, 1.0
        %v469 = vrcp.pop %v467
        %v470 = vmul.f32 1.0, %v469
        %v471 = vrcp.pop %v468
        %v472 = vmul.f32 1.0, %v471
        %v473 = vmul.f32 %v470, 0.0625
        %v474 = vmul.f32 %v472, 0.0625
        %v475 = vadd.f32 %v473, %v208
        %v476 = vadd.f32 %v474, %v212
        %v477 = vadd.f32 %v473, %v221
        %v478 = vadd.f32 %v474, %v225
        %s479 = sld [smem:[#allocation2 + $0x100]]
        %s480 = sld [smem:[#allocation2 + $0x101]]
        %v481 = vmul.f32 %v459, 1.442695
        %v482 = vpow.pop %v481
        %v483 = vmul.f32 %v460, 1.442695
        %v484 = vpow.pop %v483
        %v485 = vstv %s479
        %v486 = vmul.f32 %v482, %v485
        %v487 = vmul.f32 %v484, %v485
        %v488 = vstv %s480
        %v489 = vmul.f32 %v482, %v488
        %v490 = vmul.f32 %v484, %v488
        %v493 = vcombine.low %v475, %v476
        %v495 = vunpack.c.l.s4 1966171168
        %v496 = vunpack.c.0.s8 %v495
        %v497 = vlaneseq
        %v498 = vshrl.u32 %v497, 7
        %v499 = vsub.s32 %v496, %v498
        %v500 = vrot.slane %v493, %v499
        %v502 = vunpack.c.l.s4 1966171168
        %v503 = vunpack.c.0.s8 %v502
        %v504 = vlaneseq
        %v505 = vshrl.u32 %v504, 7
        %v506 = vsub.s32 %v503, %v505
        %v507 = vrot.slane %v500, %v506
        %s509 = scalar_lea.vmem %s184, 32
        %510 = vst.msk [vmem:[%s509] ss:$8 sm:$0x3] %vm263, %v507
        %511 = vst.msk [vmem:[%s509] ss:$8 sm:$0x0] %vm263, %v507
        %v514 = vcombine.low %v477, %v478
        %v516 = vunpack.c.l.s4 1966171168
        %v517 = vunpack.c.0.s8 %v516
        %v518 = vlaneseq
        %v519 = vshrl.u32 %v518, 7
        %v520 = vsub.s32 %v517, %v519
        %v521 = vrot.slane %v514, %v520
        %v522 = vcombine.high %v521, %v521
        %v524 = vunpack.c.l.s4 1966171168
        %v525 = vunpack.c.0.s8 %v524
        %v526 = vlaneseq
        %v527 = vshrl.u32 %v526, 7
        %v528 = vsub.s32 %v525, %v527
        %v529 = vrot.slane %v522, %v528
        %s531 = scalar_lea.vmem %s509, 1
        %532 = vst.msk [vmem:[%s531] ss:$8 sm:$0x3] %vm263, %v529
        %533 = vst.msk [vmem:[%s531] ss:$8 sm:$0x0] %vm263, %v529
        %v536 = vcombine.low %v486, %v487
        %v538 = vunpack.c.l.s4 1966171168
        %v539 = vunpack.c.0.s8 %v538
        %v540 = vlaneseq
        %v541 = vshrl.u32 %v540, 7
        %v542 = vsub.s32 %v539, %v541
        %v543 = vrot.slane %v536, %v542
        %v545 = vunpack.c.l.s4 1966171168
        %v546 = vunpack.c.0.s8 %v545
        %v547 = vlaneseq
        %v548 = vshrl.u32 %v547, 7
        %v549 = vsub.s32 %v546, %v548
        %v550 = vrot.slane %v543, %v549
        %v551 = vcombine.high %v550, %v550
        %s553 = scalar_lea.vmem %s509, 2
        %554 = vst.msk [vmem:[%s553] ss:$8 sm:$0x3] %vm263, %v551
        %555 = vst.msk [vmem:[%s553] ss:$8 sm:$0x0] %vm263, %v551
        %v558 = vcombine.low %v489, %v490
        %v560 = vunpack.c.l.s4 1966171168
        %v561 = vunpack.c.0.s8 %v560
        %v562 = vlaneseq
        %v563 = vshrl.u32 %v562, 7
        %v564 = vsub.s32 %v561, %v563
        %v565 = vrot.slane %v558, %v564
        %v566 = vcombine.high %v565, %v565
        %v568 = vunpack.c.l.s4 1966171168
        %v569 = vunpack.c.0.s8 %v568
        %v570 = vlaneseq
        %v571 = vshrl.u32 %v570, 7
        %v572 = vsub.s32 %v569, %v571
        %v573 = vrot.slane %v566, %v572
        %v574 = vcombine.high %v573, %v573
        %s576 = scalar_lea.vmem %s509, 3
        %577 = vst.msk [vmem:[%s576] ss:$8 sm:$0x3] %vm263, %v574
        %578 = vst.msk [vmem:[%s576] ss:$8 sm:$0x0] %vm263, %v574
        %579 = vst [vmem:[%s509] sm:$0x30] %v470
        %580 = vst [vmem:[%s509 + $0x8] sm:$0x30] %v472
        %p581 = scmp.lt.s32.totalorder %s15, 1
        %s582 = scalar_select %p581, %s15, 1
        %s583 = smul.addr %s582, 6
        %s584 = smul.addr %s583, 8
        %s585 = scalar_lea.vmem %s3, %s584
        // Predicated region
        $region37: #{tpu_custom_call.1} parent=31 // pred_check
          %p586 = pneg %p101
        $region38: #{tpu_custom_call.1} parent=31 // pred_check_branch
          %588 = sbr.rel (%p586) target = $region40
        $region39: #{tpu_custom_call.1} parent=31 // pred_region
          _
        $region40: #{tpu_custom_call.1} parent=31 // pred_fallthru
          _
      $region32: #{tpu_custom_call.1} parent=5 // pred_fallthru
        _
      %p589 = scmp.le.s32.totalorder 2, %s10
      // Predicated region
      $region41: #{tpu_custom_call.1} parent=5 // pred_check
        %p590 = pneg %p589
      $region42: #{tpu_custom_call.1} parent=5 // pred_check_branch
        %592 = sbr.rel (%p590) target = $region44
      $region43: #{tpu_custom_call.1} parent=5 // pred_region
        %s593 = ssub.s32 %s10, 2
        // Predicated region
        $region45: #{tpu_custom_call.1} parent=43 // pred_check
          %p594 = pneg %p107
        $region46: #{tpu_custom_call.1} parent=43 // pred_check_branch
          %596 = sbr.rel (%p594) target = $region48
        $region47: #{tpu_custom_call.1} parent=43 // pred_region
          %p597 = scmp.lt.s32.totalorder %s16, 1
          %s598 = scalar_select %p597, %s16, 1
          %s599 = smul.addr %s598, 6
          %s600 = smul.addr %s599, 8
          %s601 = scalar_lea.vmem %s3, %s600
        $region48: #{tpu_custom_call.1} parent=43 // pred_fallthru
          _
      $region44: #{tpu_custom_call.1} parent=5 // pred_fallthru
        _
    $region6: #{tpu_custom_call.1} parent=1 // loop_footer
      %s14 = sadd.s32 1, %s10
    $region7: #{tpu_custom_call.1} parent=1 // loop_footer_branch
      %9 = sbr.rel target = $region3
    $region8: #{tpu_custom_call.1} parent=1 // loop_exit
      _
    %602 = vsyncpa [#allocation3], 1
    %s603 = scalar_lea.sflag [#allocation3], 1
    %604 = vsyncpa %s603, 1

</llo_original>
